<compile_context>
chip_gen: v7x
topology: tpu7x:2x2x1
jax: 0.10.0
libtpu: 0.0.40
codegen_flags: <defaults>
</compile_context>

<pallas_src>
import jax
import jax.numpy as jnp
from jax.experimental import pallas as pl
from jax.experimental.pallas import tpu as pltpu


STATE_DIM = 4   # CartPole-v1 observation space
HIDDEN = 64


def _round_up(x, m):
    return (x + m - 1) // m * m


def critic_kernel(xT_ref, w1_ref, b1_ref, w2_ref, b2_ref, w3_ref, b3_ref, o_ref):
    # xT_ref: (state_dim, TB)      -- batch on lanes (lane-dense load)
    # w1_ref: (hidden, state_dim)   b1_ref: (hidden, 1)
    # w2_ref: (hidden, hidden)      b2_ref: (hidden, 1)
    # w3_ref: (hidden, 1)           b3_ref: (1, 1)
    # o_ref : (1, TB)               -- lane-dense value store
    xT = xT_ref[...]
    state_dim = xT_ref.shape[0]

    # ---- fc1 + ReLU: K=4 is degenerate on the MXU -> broadcast FMAs on the
    #      VPU, kept in f32 (exact; also v5e has no bf16 VPU).
    h1 = b1_ref[...] + w1_ref[:, 0:1] * xT[0:1, :]
    for k in range(1, state_dim):
        h1 = h1 + w1_ref[:, k:k + 1] * xT[k:k + 1, :]
    h1 = jnp.maximum(h1, 0.0)                                 # (hidden, TB) f32

    # ---- fc2 + ReLU: the one real MXU matmul.  Intentionally bf16 operands
    #      (matches what the MXU does to f32 operands at default precision),
    #      f32 accumulation.
    h2 = jnp.dot(w2_ref[...].astype(jnp.bfloat16),
                 h1.astype(jnp.bfloat16),
                 preferred_element_type=jnp.float32)
    h2 = jnp.maximum(h2 + b2_ref[...], 0.0)                   # (hidden, TB) f32

    # ---- fc3: N=1 is degenerate on the MXU -> elementwise mul + sublane
    #      reduce (XLU), f32.
    v = jnp.sum(h2 * w3_ref[...], axis=0, keepdims=True)      # (1, TB)
    o_ref[...] = (v + b3_ref[...]).astype(o_ref.dtype)


def critic_forward_transposed(xT, params, *, max_block_b=4096, min_batch_tiles=2):
    """Primary (zero-extra-copy) entry point.

    xT: (state_dim, B) float32, features-major / batch-on-lanes (the layout an
    upstream rollout buffer should store).  Returns (B, 1) float32.
    """
    w1, b1, w2, b2, w3, b3 = params
    sd, B = xT.shape
    hidden = w1.shape[0]

    # Batch tile: lane-dense (multiple of 128), large enough to amortise the
    # per-grid-step overhead, but split into >= min_batch_tiles tiles whenever
    # B > 128 so v7x's two TensorCores both get work.
    if B <= 128:
        tb = 128
    else:
        tb = min(max_block_b, _round_up(pl.cdiv(B, min_batch_tiles), 128))

    # Only tiny batches (< 128) ever need padding (a <=2 KB copy).  Large
    # batches run pad-free; the ragged final tile is clamped by Pallas.
    b_eff = max(B, tb)
    if b_eff != B:
        xT = jnp.pad(xT, ((0, 0), (0, b_eff - B)))
    grid_b = pl.cdiv(b_eff, tb)

    out = pl.pallas_call(
        critic_kernel,
        out_shape=jax.ShapeDtypeStruct((1, b_eff), jnp.float32),
        grid=(grid_b,),
        in_specs=[
            pl.BlockSpec((sd, tb), lambda i: (0, i)),           # x tile (streamed)
            pl.BlockSpec((hidden, sd), lambda i: (0, 0)),       # w1 (VMEM-resident)
            pl.BlockSpec((hidden, 1), lambda i: (0, 0)),        # b1
            pl.BlockSpec((hidden, hidden), lambda i: (0, 0)),   # w2
            pl.BlockSpec((hidden, 1), lambda i: (0, 0)),        # b2
            pl.BlockSpec((hidden, 1), lambda i: (0, 0)),        # w3 (column)
            pl.BlockSpec((1, 1), lambda i: (0, 0)),             # b3
        ],
        out_specs=pl.BlockSpec((1, tb), lambda i: (0, i)),      # lane-dense values
        compiler_params=pltpu.CompilerParams(
            dimension_semantics=("parallel",),    # shard batch tiles across TCs on v7x
            vmem_limit_bytes=32 * 1024 * 1024,    # headroom for larger max_block_b (v5e)
        ),
        cost_estimate=pl.CostEstimate(
            flops=2 * b_eff * (sd * hidden + hidden * hidden + hidden),
            transcendentals=0,
            bytes_accessed=4 * (b_eff * (sd + 1)
                                + hidden * sd + hidden * hidden
                                + 3 * hidden + 1),
        ),
    )(xT, w1, b1, w2, b2, w3, b3)

    return out[0, :B].reshape(B, 1)


def critic_forward(x, params, **kwargs):
    """PyTorch-layout compatibility entry: x (B, state_dim) -> (B, 1).

    Pays exactly one transpose copy (the pad pass is gone); callers that can
    hold states features-major should use `critic_forward_transposed`.
    """
    return critic_forward_transposed(x.T, params, **kwargs)


def init_params(key, state_dim=STATE_DIM, hidden=HIDDEN):
    """PyTorch-default-style init (uniform +/- 1/sqrt(fan_in)).
    Weights kept in PyTorch (out, in) layout; fc3 weight stored as (hidden, 1)."""
    keys = jax.random.split(key, 6)

    def uniform(k, shape, fan_in):
        bound = 1.0 / jnp.sqrt(jnp.float32(fan_in))
        return jax.random.uniform(k, shape, jnp.float32, -bound, bound)

    w1 = uniform(keys[0], (hidden, state_dim), state_dim)
    b1 = uniform(keys[1], (hidden, 1), state_dim)
    w2 = uniform(keys[2], (hidden, hidden), hidden)
    b2 = uniform(keys[3], (hidden, 1), hidden)
    w3 = uniform(keys[4], (hidden, 1), hidden)
    b3 = uniform(keys[5], (1, 1), hidden)
    return (w1, b1, w2, b2, w3, b3)


def critic_ref_f32(x, params):
    """Exact-f32 reference matching the PyTorch forward (HIGHEST precision)."""
    w1, b1, w2, b2, w3, b3 = params
    hp = jax.lax.Precision.HIGHEST
    h1 = jnp.maximum(jnp.dot(x, w1.T, precision=hp) + b1.T, 0.0)
    h2 = jnp.maximum(jnp.dot(h1, w2.T, precision=hp) + b2.T, 0.0)
    return jnp.dot(h2, w3, precision=hp) + b3.T


def critic_ref_matched(x, params):
    """Reference with the kernel's numerics: exact-f32 fc1/fc3, bf16-operand
    f32-accumulate fc2 (the MXU path)."""
    w1, b1, w2, b2, w3, b3 = params
    hp = jax.lax.Precision.HIGHEST
    h1 = jnp.maximum(jnp.dot(x, w1.T, precision=hp) + b1.T, 0.0)
    h2 = jnp.dot(h1.astype(jnp.bfloat16), w2.T.astype(jnp.bfloat16),
                 preferred_element_type=jnp.float32)
    h2 = jnp.maximum(h2 + b2.T, 0.0)
    return jnp.dot(h2, w3, precision=hp) + b3.T


if __name__ == "__main__":
    key = jax.random.PRNGKey(0)
    k_params, k_x1, k_x2 = jax.random.split(key, 3)

    params = init_params(k_params)

    # Small batch through the PyTorch-layout compatibility wrapper.
    x_small = jax.random.normal(k_x1, (8, STATE_DIM), jnp.float32)
    out_small = jax.block_until_ready(critic_forward(x_small, params))
    assert out_small.shape == (8, 1)
    assert jnp.allclose(out_small, critic_ref_matched(x_small, params),
                        atol=1e-3, rtol=1e-3), "mismatch vs matched-numerics ref (small)"
    assert jnp.allclose(out_small, critic_ref_f32(x_small, params),
                        atol=3e-2, rtol=3e-2), "mismatch vs exact-f32 ref (small)"

    # Larger batch through the features-major (zero-extra-copy) entry point:
    # exercises >=2 grid tiles and a ragged (unpadded) final tile.
    xT_big = jax.random.normal(k_x2, (STATE_DIM, 600), jnp.float32)
    out_big = jax.block_until_ready(critic_forward_transposed(xT_big, params))
    x_big = xT_big.T
    assert out_big.shape == (600, 1)
    assert jnp.allclose(out_big, critic_ref_matched(x_big, params),
                        atol=1e-3, rtol=1e-3), "mismatch vs matched-numerics ref (large)"
    assert jnp.allclose(out_big, critic_ref_f32(x_big, params),
                        atol=3e-2, rtol=3e-2), "mismatch vs exact-f32 ref (large)"

    print("KERNEL_OK")
</pallas_src>

<mosaic_0001>
module attributes {stable_mosaic.version = 11 : i64} {
  func.func @critic_kernel(%arg0: i32, %arg1: memref<4x128xf32, #tpu.memory_space<vmem>>, %arg2: memref<64x4xf32, #tpu.memory_space<vmem>>, %arg3: memref<64x1xf32, #tpu.memory_space<vmem>>, %arg4: memref<64x64xf32, #tpu.memory_space<vmem>>, %arg5: memref<64x1xf32, #tpu.memory_space<vmem>>, %arg6: memref<64x1xf32, #tpu.memory_space<vmem>>, %arg7: memref<1x1xf32, #tpu.memory_space<vmem>>, %arg8: memref<1x128xf32, #tpu.memory_space<vmem>>) attributes {dimension_semantics = [#tpu.dimension_semantics<parallel>], iteration_bounds = array<i64: 1>, scalar_prefetch = 0 : i64, scratch_operands = 0 : i64, tpu.core_type = #tpu.core_type<tc>, window_params = [{transform_indices = @transform_0, window_bounds = array<i64: 4, 128>}, {pipeline_mode = #tpu.pipeline_mode<synchronous>, transform_indices = @transform_1, window_bounds = array<i64: 64, 4>}, {pipeline_mode = #tpu.pipeline_mode<synchronous>, transform_indices = @transform_2, window_bounds = array<i64: 64, 1>}, {pipeline_mode = #tpu.pipeline_mode<synchronous>, transform_indices = @transform_3, window_bounds = array<i64: 64, 64>}, {pipeline_mode = #tpu.pipeline_mode<synchronous>, transform_indices = @transform_4, window_bounds = array<i64: 64, 1>}, {pipeline_mode = #tpu.pipeline_mode<synchronous>, transform_indices = @transform_5, window_bounds = array<i64: 64, 1>}, {pipeline_mode = #tpu.pipeline_mode<synchronous>, transform_indices = @transform_6, window_bounds = array<i64: 1, 1>}, {transform_indices = @transform_7, window_bounds = array<i64: 1, 128>}]} {
    %c0 = arith.constant 0 : index
    %c0_0 = arith.constant 0 : index
    %0 = vector.load %arg1[%c0, %c0_0] : memref<4x128xf32, #tpu.memory_space<vmem>>, vector<4x128xf32>
    %c0_1 = arith.constant 0 : index
    %c0_2 = arith.constant 0 : index
    %1 = vector.load %arg3[%c0_1, %c0_2] : memref<64x1xf32, #tpu.memory_space<vmem>>, vector<64x1xf32>
    %c0_3 = arith.constant 0 : index
    %c0_4 = arith.constant 0 : index
    %2 = vector.load %arg2[%c0_3, %c0_4] : memref<64x4xf32, #tpu.memory_space<vmem>>, vector<64x1xf32>
    %3 = vector.extract_strided_slice %0 {offsets = [0, 0], sizes = [1, 128], strides = [1, 1]} : vector<4x128xf32> to vector<1x128xf32>
    %4 = vector.broadcast %2 : vector<64x1xf32> to vector<64x128xf32>
    %5 = vector.broadcast %3 : vector<1x128xf32> to vector<64x128xf32>
    %6 = arith.mulf %4, %5 : vector<64x128xf32>
    %7 = vector.broadcast %1 : vector<64x1xf32> to vector<64x128xf32>
    %8 = arith.addf %7, %6 : vector<64x128xf32>
    %c0_5 = arith.constant 0 : index
    %c1 = arith.constant 1 : index
    %9 = vector.load %arg2[%c0_5, %c1] : memref<64x4xf32, #tpu.memory_space<vmem>>, vector<64x1xf32>
    %10 = vector.extract_strided_slice %0 {offsets = [1, 0], sizes = [1, 128], strides = [1, 1]} : vector<4x128xf32> to vector<1x128xf32>
    %11 = vector.broadcast %9 : vector<64x1xf32> to vector<64x128xf32>
    %12 = vector.broadcast %10 : vector<1x128xf32> to vector<64x128xf32>
    %13 = arith.mulf %11, %12 : vector<64x128xf32>
    %14 = arith.addf %8, %13 : vector<64x128xf32>
    %c0_6 = arith.constant 0 : index
    %c2 = arith.constant 2 : index
    %15 = vector.load %arg2[%c0_6, %c2] : memref<64x4xf32, #tpu.memory_space<vmem>>, vector<64x1xf32>
    %16 = vector.extract_strided_slice %0 {offsets = [2, 0], sizes = [1, 128], strides = [1, 1]} : vector<4x128xf32> to vector<1x128xf32>
    %17 = vector.broadcast %15 : vector<64x1xf32> to vector<64x128xf32>
    %18 = vector.broadcast %16 : vector<1x128xf32> to vector<64x128xf32>
    %19 = arith.mulf %17, %18 : vector<64x128xf32>
    %20 = arith.addf %14, %19 : vector<64x128xf32>
    %c0_7 = arith.constant 0 : index
    %c3 = arith.constant 3 : index
    %21 = vector.load %arg2[%c0_7, %c3] : memref<64x4xf32, #tpu.memory_space<vmem>>, vector<64x1xf32>
    %22 = vector.extract_strided_slice %0 {offsets = [3, 0], sizes = [1, 128], strides = [1, 1]} : vector<4x128xf32> to vector<1x128xf32>
    %23 = vector.broadcast %21 : vector<64x1xf32> to vector<64x128xf32>
    %24 = vector.broadcast %22 : vector<1x128xf32> to vector<64x128xf32>
    %25 = arith.mulf %23, %24 : vector<64x128xf32>
    %26 = arith.addf %20, %25 : vector<64x128xf32>
    %cst = arith.constant 0.000000e+00 : f32
    %27 = vector.broadcast %cst : f32 to vector<64x128xf32>
    %28 = arith.maximumf %26, %27 : vector<64x128xf32>
    %c0_8 = arith.constant 0 : index
    %c0_9 = arith.constant 0 : index
    %29 = vector.load %arg4[%c0_8, %c0_9] : memref<64x64xf32, #tpu.memory_space<vmem>>, vector<64x64xf32>
    %30 = arith.truncf %29 : vector<64x64xf32> to vector<64x64xbf16>
    %31 = arith.truncf %28 : vector<64x128xf32> to vector<64x128xbf16>
    %cst_10 = arith.constant dense<0.000000e+00> : vector<64x128xf32>
    %32 = tpu.matmul %30, %31, %cst_10 {dimension_numbers = #tpu.dot_dimension_numbers<[1], [0], [0], [1], [0, 0, 1, 1], [], []>} : vector<64x64xbf16>, vector<64x128xbf16>, vector<64x128xf32> -> vector<64x128xf32>
    %c0_11 = arith.constant 0 : index
    %c0_12 = arith.constant 0 : index
    %33 = vector.load %arg5[%c0_11, %c0_12] : memref<64x1xf32, #tpu.memory_space<vmem>>, vector<64x1xf32>
    %34 = vector.broadcast %33 : vector<64x1xf32> to vector<64x128xf32>
    %35 = arith.addf %32, %34 : vector<64x128xf32>
    %cst_13 = arith.constant 0.000000e+00 : f32
    %36 = vector.broadcast %cst_13 : f32 to vector<64x128xf32>
    %37 = arith.maximumf %35, %36 : vector<64x128xf32>
    %c0_14 = arith.constant 0 : index
    %c0_15 = arith.constant 0 : index
    %38 = vector.load %arg6[%c0_14, %c0_15] : memref<64x1xf32, #tpu.memory_space<vmem>>, vector<64x1xf32>
    %39 = vector.broadcast %38 : vector<64x1xf32> to vector<64x128xf32>
    %40 = arith.mulf %37, %39 : vector<64x128xf32>
    %cst_16 = arith.constant dense<0.000000e+00> : vector<128xf32>
    %41 = vector.multi_reduction <add>, %40, %cst_16 [0] : vector<64x128xf32> to vector<128xf32>
    %42 = vector.shape_cast %41 : vector<128xf32> to vector<1x128xf32>
    %c0_17 = arith.constant 0 : index
    %c0_18 = arith.constant 0 : index
    %43 = vector.load %arg7[%c0_17, %c0_18] : memref<1x1xf32, #tpu.memory_space<vmem>>, vector<1x1xf32>
    %44 = vector.broadcast %43 : vector<1x1xf32> to vector<1x128xf32>
    %45 = arith.addf %42, %44 : vector<1x128xf32>
    %c0_19 = arith.constant 0 : index
    %c0_20 = arith.constant 0 : index
    %46 = vector.load %arg8[%c0_19, %c0_20] : memref<1x128xf32, #tpu.memory_space<vmem>>, vector<1x128xf32>
    tpu.vector_store %arg8[%c0_19, %c0_20], %45 {strides = array<i32>} : memref<1x128xf32, #tpu.memory_space<vmem>>, vector<1x128xf32>,
    return
  }
  func.func @transform_0(%arg0: i32) -> (i32, i32) {
    %c0_i32 = arith.constant 0 : i32
    %c0_i32_0 = arith.constant 0 : i32
    return %c0_i32, %arg0 : i32, i32
  }
  func.func @transform_1(%arg0: i32) -> (i32, i32) {
    %c0_i32 = arith.constant 0 : i32
    %c0_i32_0 = arith.constant 0 : i32
    %c0_i32_1 = arith.constant 0 : i32
    return %c0_i32, %c0_i32_0 : i32, i32
  }
  func.func @transform_2(%arg0: i32) -> (i32, i32) {
    %c0_i32 = arith.constant 0 : i32
    %c0_i32_0 = arith.constant 0 : i32
    %c0_i32_1 = arith.constant 0 : i32
    return %c0_i32, %c0_i32_0 : i32, i32
  }
  func.func @transform_3(%arg0: i32) -> (i32, i32) {
    %c0_i32 = arith.constant 0 : i32
    %c0_i32_0 = arith.constant 0 : i32
    %c0_i32_1 = arith.constant 0 : i32
    return %c0_i32, %c0_i32_0 : i32, i32
  }
  func.func @transform_4(%arg0: i32) -> (i32, i32) {
    %c0_i32 = arith.constant 0 : i32
    %c0_i32_0 = arith.constant 0 : i32
    %c0_i32_1 = arith.constant 0 : i32
    return %c0_i32, %c0_i32_0 : i32, i32
  }
  func.func @transform_5(%arg0: i32) -> (i32, i32) {
    %c0_i32 = arith.constant 0 : i32
    %c0_i32_0 = arith.constant 0 : i32
    %c0_i32_1 = arith.constant 0 : i32
    return %c0_i32, %c0_i32_0 : i32, i32
  }
  func.func @transform_6(%arg0: i32) -> (i32, i32) {
    %c0_i32 = arith.constant 0 : i32
    %c0_i32_0 = arith.constant 0 : i32
    %c0_i32_1 = arith.constant 0 : i32
    return %c0_i32, %c0_i32_0 : i32, i32
  }
  func.func @transform_7(%arg0: i32) -> (i32, i32) {
    %c0_i32 = arith.constant 0 : i32
    %c0_i32_0 = arith.constant 0 : i32
    return %c0_i32, %arg0 : i32, i32
  }
}

</mosaic_0001>

<llo_original>
// kernel: tpu_custom_call.1
$region0: #{tpu_custom_call.1}
  #allocation0 [shape = 'u32[]', space=smem, size = 0x4, offset = 0x4, fixed_abs, tag = 'smem constant byte address 0x4 - core index']
  #allocation1 [shape = 'u32[144,128]{1,0:T(1,128)}', space=vmem, size = 0x12000, scoped, tag = 'internal scratch']
  #allocation2 [shape = 'f32[1,1]{1,0:T(1,128)S(1)}', space=vmem, size = 0x200, scoped, tag = 'scoped memory for tpu_custom_call.1']
  %s0 = inlined_call_operand.vmem [shape: f32[4,128], index: 0, kind: input, shape index: {}]
  %s1 = inlined_call_operand.vmem [shape: f32[64,4], index: 1, kind: input, shape index: {}]
  %s2 = inlined_call_operand.vmem [shape: f32[64,1], index: 2, kind: input, shape index: {}]
  %s3 = inlined_call_operand.vmem [shape: f32[64,64], index: 3, kind: input, shape index: {}]
  %s4 = inlined_call_operand.vmem [shape: f32[64,1], index: 4, kind: input, shape index: {}]
  %s5 = inlined_call_operand.vmem [shape: f32[64,1], index: 5, kind: input, shape index: {}]
  %s6 = inlined_call_operand.<no memory space> [shape: f32[1,1], index: 6, kind: input, shape index: {}]
  %s7 = inlined_call_operand.hbm [shape: f32[1,128], index: 7, kind: output, shape index: {}]
  %s8 = sld [smem:[#allocation0]]
  $region38: #{tpu_custom_call.1} parent=0
    _
  %s10 = ssub.s32 1, %s8
  %s11 = scalar_select 0, %s10, %s8
  %v12 = vstv %s6
  %13 = vst [vmem:[#allocation2] sm:$0x1] %v12
  $region1: #{tpu_custom_call.1} parent=0
    #allocation3 [shape = 'u8[512]{0}', space=vmem, size = 0x400, scoped, tag = 'output window, operand 0, single buffered']
    #allocation4 [shape = 's32[1]{0}', space=sflag, size = 0x4, scoped, tag = 'scoped memory for tpu_custom_call.1']
    %14 = vsyncpa [#allocation4], 0
    // Predicated region
    $region2: #{tpu_custom_call.1} parent=1 // pred_check
      _
    $region3: #{tpu_custom_call.1} parent=1 // pred_check_branch
      %16 = sbr.rel (0) target = $region5
    $region4: #{tpu_custom_call.1} parent=1 // pred_region
      _
    $region5: #{tpu_custom_call.1} parent=1 // pred_fallthru
      _
    // Predicated region
    $region6: #{tpu_custom_call.1} parent=1 // pred_check
      _
    $region7: #{tpu_custom_call.1} parent=1 // pred_check_branch
      %18 = sbr.rel (0) target = $region9
    $region8: #{tpu_custom_call.1} parent=1 // pred_region
      _
    $region9: #{tpu_custom_call.1} parent=1 // pred_fallthru
      _
    // Predicated region
    $region10: #{tpu_custom_call.1} parent=1 // pred_check
      _
    $region11: #{tpu_custom_call.1} parent=1 // pred_check_branch
      %20 = sbr.rel (0) target = $region13
    $region12: #{tpu_custom_call.1} parent=1 // pred_region
      _
    $region13: #{tpu_custom_call.1} parent=1 // pred_fallthru
      _
    // Predicated region
    $region14: #{tpu_custom_call.1} parent=1 // pred_check
      _
    $region15: #{tpu_custom_call.1} parent=1 // pred_check_branch
      %22 = sbr.rel (0) target = $region17
    $region16: #{tpu_custom_call.1} parent=1 // pred_region
      _
    $region17: #{tpu_custom_call.1} parent=1 // pred_fallthru
      _
    // Predicated region
    $region18: #{tpu_custom_call.1} parent=1 // pred_check
      _
    $region19: #{tpu_custom_call.1} parent=1 // pred_check_branch
      %24 = sbr.rel (0) target = $region21
    $region20: #{tpu_custom_call.1} parent=1 // pred_region
      _
    $region21: #{tpu_custom_call.1} parent=1 // pred_fallthru
      _
    // Predicated region
    $region22: #{tpu_custom_call.1} parent=1 // pred_check
      _
    $region23: #{tpu_custom_call.1} parent=1 // pred_check_branch
      %26 = sbr.rel (0) target = $region25
    $region24: #{tpu_custom_call.1} parent=1 // pred_region
      _
    $region25: #{tpu_custom_call.1} parent=1 // pred_fallthru
      _
    // Predicated region
    $region26: #{tpu_custom_call.1} parent=1 // pred_check
      _
    $region27: #{tpu_custom_call.1} parent=1 // pred_check_branch
      %28 = sbr.rel (0) target = $region29
    $region28: #{tpu_custom_call.1} parent=1 // pred_region
      _
    $region29: #{tpu_custom_call.1} parent=1 // pred_fallthru
      _
    %v30 = vld [vmem:[%s0] sm:$0xf]
    %v31 = vld [vmem:[%s2] sm:$0xff]
    %v32 = vld [vmem:[%s2 + $0x8] sm:$0xff]
    %v33 = vld [vmem:[%s2 + $0x10] sm:$0xff]
    %v34 = vld [vmem:[%s2 + $0x18] sm:$0xff]
    %v35 = vld [vmem:[%s2 + $0x20] sm:$0xff]
    %v36 = vld [vmem:[%s2 + $0x28] sm:$0xff]
    %v37 = vld [vmem:[%s2 + $0x30] sm:$0xff]
    %v38 = vld [vmem:[%s2 + $0x38] sm:$0xff]
    %v39 = vld [vmem:[%s1] sm:$0xff]
    %v40 = vld [vmem:[%s1 + $0x8] sm:$0xff]
    %v41 = vld [vmem:[%s1 + $0x10] sm:$0xff]
    %v42 = vld [vmem:[%s1 + $0x18] sm:$0xff]
    %v43 = vld [vmem:[%s1 + $0x20] sm:$0xff]
    %v44 = vld [vmem:[%s1 + $0x28] sm:$0xff]
    %v45 = vld [vmem:[%s1 + $0x30] sm:$0xff]
    %v46 = vld [vmem:[%s1 + $0x38] sm:$0xff]
    %48 = vset.pattern.permute.xlu0 0
    %49 = vperm.xlu0 %48, %v39
    %v50 = vpop.permute.xlu0 %49
    %53 = vset.pattern.permute.xlu0 0
    %54 = vperm.xlu0 %53, %v40
    %v55 = vpop.permute.xlu0 %54
    %58 = vset.pattern.permute.xlu0 0
    %59 = vperm.xlu0 %58, %v41
    %v60 = vpop.permute.xlu0 %59
    %63 = vset.pattern.permute.xlu0 0
    %64 = vperm.xlu0 %63, %v42
    %v65 = vpop.permute.xlu0 %64
    %68 = vset.pattern.permute.xlu0 0
    %69 = vperm.xlu0 %68, %v43
    %v70 = vpop.permute.xlu0 %69
    %73 = vset.pattern.permute.xlu0 0
    %74 = vperm.xlu0 %73, %v44
    %v75 = vpop.permute.xlu0 %74
    %78 = vset.pattern.permute.xlu0 0
    %79 = vperm.xlu0 %78, %v45
    %v80 = vpop.permute.xlu0 %79
    %83 = vset.pattern.permute.xlu0 0
    %84 = vperm.xlu0 %83, %v46
    %v85 = vpop.permute.xlu0 %84
    %v87 = vlaneseq
    %v88 = vshrl.u32 %v87, 7
    %v89 = vsub.s32 0, %v88
    %v90 = vrot.slane %v30, %v89
    %v91 = vmul.f32 %v50, %v90
    %v92 = vmul.f32 %v55, %v90
    %v93 = vmul.f32 %v60, %v90
    %v94 = vmul.f32 %v65, %v90
    %v95 = vmul.f32 %v70, %v90
    %v96 = vmul.f32 %v75, %v90
    %v97 = vmul.f32 %v80, %v90
    %v98 = vmul.f32 %v85, %v90
    %100 = vset.pattern.permute.xlu0 0
    %101 = vperm.xlu0 %100, %v31
    %v102 = vpop.permute.xlu0 %101
    %105 = vset.pattern.permute.xlu0 0
    %106 = vperm.xlu0 %105, %v32
    %v107 = vpop.permute.xlu0 %106
    %110 = vset.pattern.permute.xlu0 0
    %111 = vperm.xlu0 %110, %v33
    %v112 = vpop.permute.xlu0 %111
    %115 = vset.pattern.permute.xlu0 0
    %116 = vperm.xlu0 %115, %v34
    %v117 = vpop.permute.xlu0 %116
    %120 = vset.pattern.permute.xlu0 0
    %121 = vperm.xlu0 %120, %v35
    %v122 = vpop.permute.xlu0 %121
    %125 = vset.pattern.permute.xlu0 0
    %126 = vperm.xlu0 %125, %v36
    %v127 = vpop.permute.xlu0 %126
    %130 = vset.pattern.permute.xlu0 0
    %131 = vperm.xlu0 %130, %v37
    %v132 = vpop.permute.xlu0 %131
    %135 = vset.pattern.permute.xlu0 0
    %136 = vperm.xlu0 %135, %v38
    %v137 = vpop.permute.xlu0 %136
    %v139 = vadd.f32 %v102, %v91
    %v140 = vadd.f32 %v107, %v92
    %v141 = vadd.f32 %v112, %v93
    %v142 = vadd.f32 %v117, %v94
    %v143 = vadd.f32 %v122, %v95
    %v144 = vadd.f32 %v127, %v96
    %v145 = vadd.f32 %v132, %v97
    %v146 = vadd.f32 %v137, %v98
    %147 = vset.pattern.permute.xlu0 1
    %148 = vperm.xlu0 %147, %v39
    %v149 = vpop.permute.xlu0 %148
    %151 = vset.pattern.permute.xlu0 1
    %152 = vperm.xlu0 %151, %v40
    %v153 = vpop.permute.xlu0 %152
    %155 = vset.pattern.permute.xlu0 1
    %156 = vperm.xlu0 %155, %v41
    %v157 = vpop.permute.xlu0 %156
    %159 = vset.pattern.permute.xlu0 1
    %160 = vperm.xlu0 %159, %v42
    %v161 = vpop.permute.xlu0 %160
    %163 = vset.pattern.permute.xlu0 1
    %164 = vperm.xlu0 %163, %v43
    %v165 = vpop.permute.xlu0 %164
    %167 = vset.pattern.permute.xlu0 1
    %168 = vperm.xlu0 %167, %v44
    %v169 = vpop.permute.xlu0 %168
    %171 = vset.pattern.permute.xlu0 1
    %172 = vperm.xlu0 %171, %v45
    %v173 = vpop.permute.xlu0 %172
    %175 = vset.pattern.permute.xlu0 1
    %176 = vperm.xlu0 %175, %v46
    %v177 = vpop.permute.xlu0 %176
    %v179 = vlaneseq
    %v180 = vshrl.u32 %v179, 7
    %v181 = vsub.s32 1, %v180
    %v182 = vrot.slane %v30, %v181
    %v183 = vmul.f32 %v149, %v182
    %v184 = vmul.f32 %v153, %v182
    %v185 = vmul.f32 %v157, %v182
    %v186 = vmul.f32 %v161, %v182
    %v187 = vmul.f32 %v165, %v182
    %v188 = vmul.f32 %v169, %v182
    %v189 = vmul.f32 %v173, %v182
    %v190 = vmul.f32 %v177, %v182
    %v191 = vadd.f32 %v139, %v183
    %v192 = vadd.f32 %v140, %v184
    %v193 = vadd.f32 %v141, %v185
    %v194 = vadd.f32 %v142, %v186
    %v195 = vadd.f32 %v143, %v187
    %v196 = vadd.f32 %v144, %v188
    %v197 = vadd.f32 %v145, %v189
    %v198 = vadd.f32 %v146, %v190
    %199 = vset.pattern.permute.xlu0 2
    %200 = vperm.xlu0 %199, %v39
    %v201 = vpop.permute.xlu0 %200
    %203 = vset.pattern.permute.xlu0 2
    %204 = vperm.xlu0 %203, %v40
    %v205 = vpop.permute.xlu0 %204
    %207 = vset.pattern.permute.xlu0 2
    %208 = vperm.xlu0 %207, %v41
    %v209 = vpop.permute.xlu0 %208
    %211 = vset.pattern.permute.xlu0 2
    %212 = vperm.xlu0 %211, %v42
    %v213 = vpop.permute.xlu0 %212
    %215 = vset.pattern.permute.xlu0 2
    %216 = vperm.xlu0 %215, %v43
    %v217 = vpop.permute.xlu0 %216
    %219 = vset.pattern.permute.xlu0 2
    %220 = vperm.xlu0 %219, %v44
    %v221 = vpop.permute.xlu0 %220
    %223 = vset.pattern.permute.xlu0 2
    %224 = vperm.xlu0 %223, %v45
    %v225 = vpop.permute.xlu0 %224
    %227 = vset.pattern.permute.xlu0 2
    %228 = vperm.xlu0 %227, %v46
    %v229 = vpop.permute.xlu0 %228
    %v231 = vlaneseq
    %v232 = vshrl.u32 %v231, 7
    %v233 = vsub.s32 2, %v232
    %v234 = vrot.slane %v30, %v233
    %v235 = vmul.f32 %v201, %v234
    %v236 = vmul.f32 %v205, %v234
    %v237 = vmul.f32 %v209, %v234
    %v238 = vmul.f32 %v213, %v234
    %v239 = vmul.f32 %v217, %v234
    %v240 = vmul.f32 %v221, %v234
    %v241 = vmul.f32 %v225, %v234
    %v242 = vmul.f32 %v229, %v234
    %v243 = vadd.f32 %v191, %v235
    %v244 = vadd.f32 %v192, %v236
    %v245 = vadd.f32 %v193, %v237
    %v246 = vadd.f32 %v194, %v238
    %v247 = vadd.f32 %v195, %v239
    %v248 = vadd.f32 %v196, %v240
    %v249 = vadd.f32 %v197, %v241
    %v250 = vadd.f32 %v198, %v242
    %251 = vset.pattern.permute.xlu0 3
    %252 = vperm.xlu0 %251, %v39
    %v253 = vpop.permute.xlu0 %252
    %255 = vset.pattern.permute.xlu0 3
    %256 = vperm.xlu0 %255, %v40
    %v257 = vpop.permute.xlu0 %256
    %259 = vset.pattern.permute.xlu0 3
    %260 = vperm.xlu0 %259, %v41
    %v261 = vpop.permute.xlu0 %260
    %263 = vset.pattern.permute.xlu0 3
    %264 = vperm.xlu0 %263, %v42
    %v265 = vpop.permute.xlu0 %264
    %267 = vset.pattern.permute.xlu0 3
    %268 = vperm.xlu0 %267, %v43
    %v269 = vpop.permute.xlu0 %268
    %271 = vset.pattern.permute.xlu0 3
    %272 = vperm.xlu0 %271, %v44
    %v273 = vpop.permute.xlu0 %272
    %275 = vset.pattern.permute.xlu0 3
    %276 = vperm.xlu0 %275, %v45
    %v277 = vpop.permute.xlu0 %276
    %279 = vset.pattern.permute.xlu0 3
    %280 = vperm.xlu0 %279, %v46
    %v281 = vpop.permute.xlu0 %280
    %v283 = vlaneseq
    %v284 = vshrl.u32 %v283, 7
    %v285 = vsub.s32 3, %v284
    %v286 = vrot.slane %v30, %v285
    %v287 = vmul.f32 %v253, %v286
    %v288 = vmul.f32 %v257, %v286
    %v289 = vmul.f32 %v261, %v286
    %v290 = vmul.f32 %v265, %v286
    %v291 = vmul.f32 %v269, %v286
    %v292 = vmul.f32 %v273, %v286
    %v293 = vmul.f32 %v277, %v286
    %v294 = vmul.f32 %v281, %v286
    %v295 = vadd.f32 %v243, %v287
    %v296 = vadd.f32 %v244, %v288
    %v297 = vadd.f32 %v245, %v289
    %v298 = vadd.f32 %v246, %v290
    %v299 = vadd.f32 %v247, %v291
    %v300 = vadd.f32 %v248, %v292
    %v301 = vadd.f32 %v249, %v293
    %v302 = vadd.f32 %v250, %v294
    %v303 = vmax.f32 %v295, 0.0
    %v304 = vmax.f32 %v296, 0.0
    %v305 = vmax.f32 %v297, 0.0
    %v306 = vmax.f32 %v298, 0.0
    %v307 = vmax.f32 %v299, 0.0
    %v308 = vmax.f32 %v300, 0.0
    %v309 = vmax.f32 %v301, 0.0
    %v310 = vmax.f32 %v302, 0.0
    %v311 = vld [vmem:[%s3] sm:$0xff]
    %v312 = vld [vmem:[%s3 + $0x8] sm:$0xff]
    %v313 = vld [vmem:[%s3 + $0x10] sm:$0xff]
    %v314 = vld [vmem:[%s3 + $0x18] sm:$0xff]
    %v315 = vld [vmem:[%s3 + $0x20] sm:$0xff]
    %v316 = vld [vmem:[%s3 + $0x28] sm:$0xff]
    %v317 = vld [vmem:[%s3 + $0x30] sm:$0xff]
    %v318 = vld [vmem:[%s3 + $0x38] sm:$0xff]
    %v319 = vpack.c.bf16 %v312, %v311
    %v320 = vpack.c.bf16 %v314, %v313
    %v321 = vpack.c.bf16 %v316, %v315
    %v322 = vpack.c.bf16 %v318, %v317
    %v323 = vpack.c.bf16 %v304, %v303
    %v324 = vpack.c.bf16 %v306, %v305
    %v325 = vpack.c.bf16 %v308, %v307
    %v326 = vpack.c.bf16 %v310, %v309
    %v327 = vld [vmem:[%s4] sm:$0xff]
    %v328 = vld [vmem:[%s4 + $0x8] sm:$0xff]
    %v329 = vld [vmem:[%s4 + $0x10] sm:$0xff]
    %v330 = vld [vmem:[%s4 + $0x18] sm:$0xff]
    %v331 = vld [vmem:[%s4 + $0x20] sm:$0xff]
    %v332 = vld [vmem:[%s4 + $0x28] sm:$0xff]
    %v333 = vld [vmem:[%s4 + $0x30] sm:$0xff]
    %v334 = vld [vmem:[%s4 + $0x38] sm:$0xff]
    %336 = vset.pattern.permute.xlu0 0
    %337 = vperm.xlu0 %336, %v327
    %v338 = vpop.permute.xlu0 %337
    %341 = vset.pattern.permute.xlu0 0
    %342 = vperm.xlu0 %341, %v328
    %v343 = vpop.permute.xlu0 %342
    %346 = vset.pattern.permute.xlu0 0
    %347 = vperm.xlu0 %346, %v329
    %v348 = vpop.permute.xlu0 %347
    %351 = vset.pattern.permute.xlu0 0
    %352 = vperm.xlu0 %351, %v330
    %v353 = vpop.permute.xlu0 %352
    %356 = vset.pattern.permute.xlu0 0
    %357 = vperm.xlu0 %356, %v331
    %v358 = vpop.permute.xlu0 %357
    %361 = vset.pattern.permute.xlu0 0
    %362 = vperm.xlu0 %361, %v332
    %v363 = vpop.permute.xlu0 %362
    %366 = vset.pattern.permute.xlu0 0
    %367 = vperm.xlu0 %366, %v333
    %v368 = vpop.permute.xlu0 %367
    %371 = vset.pattern.permute.xlu0 0
    %372 = vperm.xlu0 %371, %v334
    %v373 = vpop.permute.xlu0 %372
    %vm375 = vcmask 523264
    %v377 = vsel %vm375, %v319, 0
    %v380 = vsel %vm375, %v320, 0
    %v383 = vsel %vm375, %v321, 0
    %v386 = vsel %vm375, %v322, 0
    %388 = vmatprep.subr.bf16.mxu0 0
    %389 = vmatpush1.bf16.msra.mxu0 %v323
    %390 = vmatprep.subr.bf16.mxu0 0
    %391 = vmatpush1.bf16.msra.mxu0 %v324
    %392 = vmatprep.subr.bf16.mxu0 0
    %393 = vmatpush1.bf16.msra.mxu0 %v325
    %394 = vmatprep.subr.bf16.mxu0 0
    %395 = vmatpush1.bf16.msra.mxu0 %v326
    %396 = vmatprep.subr.bf16.mxu0 0
    %397 = vmatpush1.bf16.msra.mxu0 0
    %398 = vmatprep.subr.bf16.mxu0 0
    %399 = vmatpush1.bf16.msra.mxu0 0
    %400 = vmatprep.subr.bf16.mxu0 0
    %401 = vmatpush1.bf16.msra.mxu0 0
    %402 = vmatprep.subr.bf16.mxu0 0
    %403 = vmatpush1.bf16.msra.mxu0 0
    %404 = vmatprep.subr.bf16.mxu0 0
    %405 = vmatpush1.bf16.msra.mxu0 0
    %406 = vmatprep.subr.bf16.mxu0 0
    %407 = vmatpush1.bf16.msra.mxu0 0
    %408 = vmatprep.subr.bf16.mxu0 0
    %409 = vmatpush1.bf16.msra.mxu0 0
    %410 = vmatprep.subr.bf16.mxu0 0
    %411 = vmatpush1.bf16.msra.mxu0 0
    %412 = vmatprep.subr.bf16.mxu0 0
    %413 = vmatpush1.bf16.msra.mxu0 0
    %414 = vmatprep.subr.bf16.mxu0 0
    %415 = vmatpush1.bf16.msra.mxu0 0
    %416 = vmatprep.subr.bf16.mxu0 0
    %417 = vmatpush1.bf16.msra.mxu0 0
    %418 = vmatprep.subr.bf16.mxu0 0
    %419 = vmatpush1.bf16.msra.mxu0 0
    %420 = vmatprep.mubr.bf16.mxu0 0
    %421 = vmatmul.mubr.bf16.gmra.mrb[0].mxu0 %v377
    %v422 = vpop.f32.mrb[0].mxu0
    %v423 = vadd.f32 %v338, %v422
    %v424 = vpop.f32.mrb[0].mxu0
    %v425 = vpop.f32.mrb[0].mxu0
    %v426 = vadd.f32 %v343, %v425
    %v427 = vpop.f32.mrb[0].mxu0
    %428 = vmatprep.mubr.bf16.mxu0 0
    %429 = vmatmul.mubr.bf16.gmra.mrb[0].mxu0 %v380
    %v430 = vpop.f32.mrb[0].mxu0
    %v431 = vadd.f32 %v348, %v430
    %v432 = vpop.f32.mrb[0].mxu0
    %v433 = vpop.f32.mrb[0].mxu0
    %v434 = vadd.f32 %v353, %v433
    %v435 = vpop.f32.mrb[0].mxu0
    %436 = vmatprep.mubr.bf16.mxu0 0
    %437 = vmatmul.mubr.bf16.gmra.mrb[0].mxu0 %v383
    %v438 = vpop.f32.mrb[0].mxu0
    %v439 = vadd.f32 %v358, %v438
    %v440 = vpop.f32.mrb[0].mxu0
    %v441 = vpop.f32.mrb[0].mxu0
    %v442 = vadd.f32 %v363, %v441
    %v443 = vpop.f32.mrb[0].mxu0
    %444 = vmatprep.mubr.bf16.mxu0 0
    %445 = vmatmul.mubr.bf16.gmra.mrb[0].mxu0 %v386
    %v446 = vpop.f32.mrb[0].mxu0
    %v447 = vadd.f32 %v368, %v446
    %v448 = vpop.f32.mrb[0].mxu0
    %v449 = vpop.f32.mrb[0].mxu0
    %v450 = vadd.f32 %v373, %v449
    %v451 = vpop.f32.mrb[0].mxu0
    %452 = vdwg.mxu0
    %v453 = vmax.f32 %v423, 0.0
    %v454 = vmax.f32 %v426, 0.0
    %v455 = vmax.f32 %v431, 0.0
    %v456 = vmax.f32 %v434, 0.0
    %v457 = vmax.f32 %v439, 0.0
    %v458 = vmax.f32 %v442, 0.0
    %v459 = vmax.f32 %v447, 0.0
    %v460 = vmax.f32 %v450, 0.0
    %v461 = vld [vmem:[%s5] sm:$0xff]
    %v462 = vld [vmem:[%s5 + $0x8] sm:$0xff]
    %v463 = vld [vmem:[%s5 + $0x10] sm:$0xff]
    %v464 = vld [vmem:[%s5 + $0x18] sm:$0xff]
    %v465 = vld [vmem:[%s5 + $0x20] sm:$0xff]
    %v466 = vld [vmem:[%s5 + $0x28] sm:$0xff]
    %v467 = vld [vmem:[%s5 + $0x30] sm:$0xff]
    %v468 = vld [vmem:[%s5 + $0x38] sm:$0xff]
    %470 = vset.pattern.permute.xlu0 0
    %471 = vperm.xlu0 %470, %v461
    %v472 = vpop.permute.xlu0 %471
    %475 = vset.pattern.permute.xlu0 0
    %476 = vperm.xlu0 %475, %v462
    %v477 = vpop.permute.xlu0 %476
    %480 = vset.pattern.permute.xlu0 0
    %481 = vperm.xlu0 %480, %v463
    %v482 = vpop.permute.xlu0 %481
    %485 = vset.pattern.permute.xlu0 0
    %486 = vperm.xlu0 %485, %v464
    %v487 = vpop.permute.xlu0 %486
    %490 = vset.pattern.permute.xlu0 0
    %491 = vperm.xlu0 %490, %v465
    %v492 = vpop.permute.xlu0 %491
    %495 = vset.pattern.permute.xlu0 0
    %496 = vperm.xlu0 %495, %v466
    %v497 = vpop.permute.xlu0 %496
    %500 = vset.pattern.permute.xlu0 0
    %501 = vperm.xlu0 %500, %v467
    %v502 = vpop.permute.xlu0 %501
    %505 = vset.pattern.permute.xlu0 0
    %506 = vperm.xlu0 %505, %v468
    %v507 = vpop.permute.xlu0 %506
    %v509 = vmul.f32 %v453, %v472
    %v510 = vmul.f32 %v454, %v477
    %v511 = vmul.f32 %v455, %v482
    %v512 = vmul.f32 %v456, %v487
    %v513 = vmul.f32 %v457, %v492
    %v514 = vmul.f32 %v458, %v497
    %v515 = vmul.f32 %v459, %v502
    %v516 = vmul.f32 %v460, %v507
    %v517 = vadd.f32 %v509, %v510
    %v518 = vadd.f32 %v517, %v511
    %v519 = vadd.f32 %v518, %v512
    %v520 = vadd.f32 %v519, %v513
    %v521 = vadd.f32 %v520, %v514
    %v522 = vadd.f32 %v521, %v515
    %v523 = vadd.f32 %v522, %v516
    %v524 = vrot.slane %v523, 4
    %v525 = vadd.f32 %v523, %v524
    %v526 = vrot.slane %v525, 2
    %v527 = vadd.f32 %v525, %v526
    %v528 = vrot.slane %v527, 1
    %v529 = vadd.f32 %v527, %v528
    %v530 = vld [vmem:[#allocation2] sm:$0x1]
    %532 = vset.pattern.permute.xlu0 0
    %533 = vperm.xlu0 %532, %v530
    %v534 = vpop.permute.xlu0 %533
    %v536 = vlaneseq
    %v537 = vshrl.u32 %v536, 7
    %v538 = vsub.s32 0, %v537
    %v539 = vrot.slane %v534, %v538
    %v540 = vadd.f32 %v529, %v539
    %541 = vst [vmem:[#allocation3] sm:$0x1] %v540
    // Predicated region
    $region30: #{tpu_custom_call.1} parent=1 // pred_check
      _
    $region31: #{tpu_custom_call.1} parent=1 // pred_check_branch
      %543 = sbr.rel (0) target = $region33
    $region32: #{tpu_custom_call.1} parent=1 // pred_region
      %s545 = ssub.s32 16, 16
      %546 = vsyncadd [#allocation4], %s545
      %s548 = sshll.u32 [#allocation3], 4
      %s549 = int_to_ptr.vmem [resolvable:$true] %s548
      %551 = dma.vmem_to_hbm [thread:$0]  %s549, 16, %s7, [#allocation4]
    $region33: #{tpu_custom_call.1} parent=1 // pred_fallthru
      _
    // Predicated region
    $region34: #{tpu_custom_call.1} parent=1 // pred_check
      _
    $region35: #{tpu_custom_call.1} parent=1 // pred_check_branch
      %553 = sbr.rel (0) target = $region37
    $region36: #{tpu_custom_call.1} parent=1 // pred_region
      %554 = dma.done [#allocation4], 16
    $region37: #{tpu_custom_call.1} parent=1 // pred_fallthru
      _
    %555 = vsyncpa [#allocation4], 1

</llo_original>
